<compile_context>
chip_gen: v7x
topology: tpu7x:2x2x1
jax: 0.10.0
libtpu: 0.0.40
codegen_flags: <defaults>
</compile_context>

<pallas_src>
import functools

import jax
import jax.numpy as jnp
from jax.experimental import pallas as pl
from jax.experimental.pallas import tpu as pltpu


def _entropymax_kernel(x_ref, t_ref, sum_ref, cnt_ref, psum_ref, pcnt_ref,
                       *, real_label, hw):
    j = pl.program_id(1)
    nj = pl.num_programs(1)
    tile_hw = x_ref.shape[-1]

    @pl.when(j == 0)
    def _():
        psum_ref[...] = jnp.zeros_like(psum_ref)
        pcnt_ref[...] = jnp.zeros_like(pcnt_ref)

    x = x_ref[...].astype(jnp.float32)            # (C, T)  pixels on lanes
    tgt = t_ref[...]                              # (1, T)  int32 labels

    # Lane validity for the (possibly partial) last tile — replaces host padding.
    col = j * tile_hw + jax.lax.broadcasted_iota(jnp.int32, (1, tile_hw), 1)
    valid = col < hw
    m = jnp.where(valid & (tgt == real_label), 1.0, 0.0)   # (1, T) selection mask
    x = jnp.where(valid, x, 0.0)                           # keep exp/log finite on garbage lanes

    # Numerically stable entropy over the channel (sublane) axis, single exp:
    #   sum_c p*logp = (sum_c e*xs)/denom - log(denom),  e = exp(xs), xs = x - max
    xmax = jnp.max(x, axis=0, keepdims=True)               # (1, T)
    xs = x - xmax
    e = jnp.exp(xs)                                        # (C, T)  (only exp in kernel)
    denom = jnp.sum(e, axis=0, keepdims=True)              # (1, T)
    s = jnp.sum(e * xs, axis=0, keepdims=True)             # (1, T)
    # per-pixel divide only (1/C of elementwise work); swap to
    # pl.reciprocal(denom, approx=True) if ~1e-4 relative error is acceptable.
    neg_ent = s / denom - jnp.log(denom)                   # (1, T)

    # Lane-wide accumulation; no per-step cross-lane reduce / scalar store.
    psum_ref[...] += neg_ent * m
    pcnt_ref[...] += m

    @pl.when(j == nj - 1)
    def _():
        sum_ref[...] = jnp.sum(psum_ref[...], axis=1, keepdims=True)
        cnt_ref[...] = jnp.sum(pcnt_ref[...], axis=1, keepdims=True)


@functools.partial(jax.jit, static_argnames=("real_label", "tile_hw"))
def entropymax_loss(inputs, targets, real_label=100, tile_hw=None):
    """inputs: (N, C, H, W) float; targets: (N, H, W) int. Returns scalar f32."""
    n, c, h, w = inputs.shape
    hw = h * w

    if tile_hw is None:
        # ~2 MiB f32 x-block budget, lane-aligned, capped at 4096 pixels.
        tile_hw = max(512, min(4096, (2 * 1024 * 1024) // (4 * c)))
        tile_hw = max(128, (tile_hw // 128) * 128)
    if hw <= tile_hw:
        tile_hw = hw                       # single full-width block (any HW allowed)
    nj = pl.cdiv(hw, tile_hw)

    x = inputs.reshape(n, c, hw)                       # free view of native NCHW
    t = targets.reshape(n, 1, hw).astype(jnp.int32)    # labels compared in-kernel

    kernel = functools.partial(_entropymax_kernel,
                               real_label=int(real_label), hw=hw)

    sums, cnts = pl.pallas_call(
        kernel,
        out_shape=(
            jax.ShapeDtypeStruct((n, 1, 1), jnp.float32),   # per-batch partial sums
            jax.ShapeDtypeStruct((n, 1, 1), jnp.float32),   # per-batch mask counts
        ),
        grid=(n, nj),
        in_specs=[
            pl.BlockSpec((None, c, tile_hw), lambda b, j: (b, 0, j)),
            pl.BlockSpec((None, 1, tile_hw), lambda b, j: (b, 0, j)),
        ],
        out_specs=(
            pl.BlockSpec((None, 1, 1), lambda b, j: (b, 0, 0)),
            pl.BlockSpec((None, 1, 1), lambda b, j: (b, 0, 0)),
        ),
        scratch_shapes=[
            pltpu.VMEM((1, tile_hw), jnp.float32),   # lane-wide sum accumulator
            pltpu.VMEM((1, tile_hw), jnp.float32),   # lane-wide count accumulator
        ],
        compiler_params=pltpu.CompilerParams(
            # batch axis parallel -> v7x megacore split; pixel-tile axis is the
            # sequential reduction axis.
            dimension_semantics=("parallel", "arbitrary"),
        ),
    )(x, t)

    # mean over selected rows (0/0 -> nan matches torch.mean of an empty tensor)
    return jnp.sum(sums) / jnp.sum(cnts)


def _entropymax_ref(inputs, targets, real_label=100):
    n, c, h, w = inputs.shape
    x = jnp.transpose(inputs, (0, 2, 3, 1)).reshape(-1, c).astype(jnp.float32)
    m = (targets.reshape(-1) == real_label).astype(jnp.float32)
    logp = jax.nn.log_softmax(x, axis=1)
    p = jax.nn.softmax(x, axis=1)
    per_row = jnp.sum(p * logp, axis=1)
    return jnp.sum(per_row * m) / jnp.sum(m)


if __name__ == "__main__":
    key = jax.random.PRNGKey(0)
    k1, k2, k3, k4 = jax.random.split(key, 4)

    REAL_LABEL = 100

    # Case 1: shapes implied by the module (N=2, C=4, H=W=16), single full tile.
    N, C, H, W = 2, 4, 16, 16
    inputs = jax.random.normal(k1, (N, C, H, W), dtype=jnp.float32)
    sel = jax.random.bernoulli(k2, p=0.5, shape=(N, H, W))
    targets = jnp.where(sel, REAL_LABEL, 0).astype(jnp.int32)

    loss = jax.block_until_ready(
        entropymax_loss(inputs, targets, real_label=REAL_LABEL))
    ref = _entropymax_ref(inputs, targets, real_label=REAL_LABEL)
    assert jnp.allclose(loss, ref, atol=2e-5, rtol=2e-5), (loss, ref)

    # Case 2: HW not a multiple of the tile -> exercises the cdiv grid +
    # in-kernel validity mask path (no host-side padding copies).
    N2, C2, H2, W2 = 2, 4, 16, 20          # HW = 320 = 128 + 128 + 64
    inputs2 = jax.random.normal(k3, (N2, C2, H2, W2), dtype=jnp.float32)
    sel2 = jax.random.bernoulli(k4, p=0.4, shape=(N2, H2, W2))
    targets2 = jnp.where(sel2, REAL_LABEL, 0).astype(jnp.int32)

    loss2 = jax.block_until_ready(
        entropymax_loss(inputs2, targets2, real_label=REAL_LABEL, tile_hw=128))
    ref2 = _entropymax_ref(inputs2, targets2, real_label=REAL_LABEL)
    assert jnp.allclose(loss2, ref2, atol=2e-5, rtol=2e-5), (loss2, ref2)

    print("KERNEL_OK")
</pallas_src>

<mosaic_0001>
module attributes {stable_mosaic.version = 11 : i64} {
  func.func @_entropymax_kernel(%arg0: i32, %arg1: i32, %arg2: memref<1x4x256xf32, #tpu.memory_space<vmem>>, %arg3: memref<1x1x256xi32, #tpu.memory_space<vmem>>, %arg4: memref<1x1x1xf32, #tpu.memory_space<vmem>>, %arg5: memref<1x1x1xf32, #tpu.memory_space<vmem>>, %arg6: memref<1x256xf32, #tpu.memory_space<vmem>>, %arg7: memref<1x256xf32, #tpu.memory_space<vmem>>) attributes {dimension_semantics = [#tpu.dimension_semantics<parallel>, #tpu.dimension_semantics<arbitrary>], iteration_bounds = array<i64: 2, 1>, scalar_prefetch = 0 : i64, scratch_operands = 2 : i64, tpu.core_type = #tpu.core_type<tc>, window_params = [{transform_indices = @transform_0, window_bounds = array<i64: 1, 4, 256>}, {transform_indices = @transform_1, window_bounds = array<i64: 1, 1, 256>}, {transform_indices = @transform_2, window_bounds = array<i64: 1, 1, 1>}, {transform_indices = @transform_3, window_bounds = array<i64: 1, 1, 1>}]} {
    %c0_i32 = arith.constant 0 : i32
    %0 = arith.cmpi eq, %arg1, %c0_i32 : i32
    %1 = arith.extui %0 : i1 to i32
    %c0_i32_0 = arith.constant 0 : i32
    %2 = arith.cmpi ne, %1, %c0_i32_0 : i32
    scf.if %2 {
      %cst_22 = arith.constant 0.000000e+00 : f32
      %46 = vector.broadcast %cst_22 : f32 to vector<1x256xf32>
      %c0_23 = arith.constant 0 : index
      %c0_24 = arith.constant 0 : index
      %47 = vector.load %arg6[%c0_23, %c0_24] : memref<1x256xf32, #tpu.memory_space<vmem>>, vector<1x256xf32>
      tpu.vector_store %arg6[%c0_23, %c0_24], %46 {strides = array<i32>} : memref<1x256xf32, #tpu.memory_space<vmem>>, vector<1x256xf32>,
      %cst_25 = arith.constant 0.000000e+00 : f32
      %48 = vector.broadcast %cst_25 : f32 to vector<1x256xf32>
      %c0_26 = arith.constant 0 : index
      %c0_27 = arith.constant 0 : index
      %49 = vector.load %arg7[%c0_26, %c0_27] : memref<1x256xf32, #tpu.memory_space<vmem>>, vector<1x256xf32>
      tpu.vector_store %arg7[%c0_26, %c0_27], %48 {strides = array<i32>} : memref<1x256xf32, #tpu.memory_space<vmem>>, vector<1x256xf32>,
    } else {
    }
    %c0 = arith.constant 0 : index
    %c0_1 = arith.constant 0 : index
    %c0_2 = arith.constant 0 : index
    %3 = vector.load %arg2[%c0, %c0_1, %c0_2] : memref<1x4x256xf32, #tpu.memory_space<vmem>>, vector<1x4x256xf32>
    %4 = vector.shape_cast %3 : vector<1x4x256xf32> to vector<4x256xf32>
    %c0_3 = arith.constant 0 : index
    %c0_4 = arith.constant 0 : index
    %c0_5 = arith.constant 0 : index
    %5 = vector.load %arg3[%c0_3, %c0_4, %c0_5] : memref<1x1x256xi32, #tpu.memory_space<vmem>>, vector<1x1x256xi32>
    %6 = vector.shape_cast %5 : vector<1x1x256xi32> to vector<1x256xi32>
    %c256_i32 = arith.constant 256 : i32
    %7 = arith.muli %arg1, %c256_i32 : i32
    %8 = tpu.iota {dimensions = array<i32: 1>} : vector<1x256xi32>
    %9 = vector.broadcast %7 : i32 to vector<1x256xi32>
    %10 = arith.addi %9, %8 : vector<1x256xi32>
    %c256_i32_6 = arith.constant 256 : i32
    %11 = vector.broadcast %c256_i32_6 : i32 to vector<1x256xi32>
    %12 = arith.cmpi slt, %10, %11 : vector<1x256xi32>
    %c100_i32 = arith.constant 100 : i32
    %13 = vector.broadcast %c100_i32 : i32 to vector<1x256xi32>
    %14 = arith.cmpi eq, %6, %13 : vector<1x256xi32>
    %15 = arith.andi %12, %14 : vector<1x256xi1>
    %cst = arith.constant 1.000000e+00 : f32
    %cst_7 = arith.constant 0.000000e+00 : f32
    %16 = vector.broadcast %cst : f32 to vector<1x256xf32>
    %17 = vector.broadcast %cst_7 : f32 to vector<1x256xf32>
    %18 = arith.select %15, %16, %17 : vector<1x256xi1>, vector<1x256xf32>
    %cst_8 = arith.constant 0.000000e+00 : f32
    %19 = vector.shape_cast %12 : vector<1x256xi1> to vector<1x256xi1>
    %20 = vector.broadcast %19 : vector<1x256xi1> to vector<4x256xi1>
    %21 = vector.broadcast %cst_8 : f32 to vector<4x256xf32>
    %22 = arith.select %20, %4, %21 : vector<4x256xi1>, vector<4x256xf32>
    %cst_9 = arith.constant dense<0xFF800000> : vector<256xf32>
    %23 = vector.multi_reduction <maximumf>, %22, %cst_9 [0] : vector<4x256xf32> to vector<256xf32>
    %24 = vector.shape_cast %23 : vector<256xf32> to vector<1x256xf32>
    %25 = vector.broadcast %24 : vector<1x256xf32> to vector<4x256xf32>
    %26 = arith.subf %22, %25 : vector<4x256xf32>
    %27 = math.exp %26 : vector<4x256xf32>
    %cst_10 = arith.constant dense<0.000000e+00> : vector<256xf32>
    %28 = vector.multi_reduction <add>, %27, %cst_10 [0] : vector<4x256xf32> to vector<256xf32>
    %29 = vector.shape_cast %28 : vector<256xf32> to vector<1x256xf32>
    %30 = arith.mulf %27, %26 : vector<4x256xf32>
    %cst_11 = arith.constant dense<0.000000e+00> : vector<256xf32>
    %31 = vector.multi_reduction <add>, %30, %cst_11 [0] : vector<4x256xf32> to vector<256xf32>
    %32 = vector.shape_cast %31 : vector<256xf32> to vector<1x256xf32>
    %33 = arith.divf %32, %29 : vector<1x256xf32>
    %34 = math.log %29 : vector<1x256xf32>
    %35 = arith.subf %33, %34 : vector<1x256xf32>
    %c0_12 = arith.constant 0 : index
    %c0_13 = arith.constant 0 : index
    %36 = vector.load %arg6[%c0_12, %c0_13] : memref<1x256xf32, #tpu.memory_space<vmem>>, vector<1x256xf32>
    %37 = arith.mulf %35, %18 : vector<1x256xf32>
    %38 = arith.addf %36, %37 : vector<1x256xf32>
    %c0_14 = arith.constant 0 : index
    %c0_15 = arith.constant 0 : index
    %39 = vector.load %arg6[%c0_14, %c0_15] : memref<1x256xf32, #tpu.memory_space<vmem>>, vector<1x256xf32>
    tpu.vector_store %arg6[%c0_14, %c0_15], %38 {strides = array<i32>} : memref<1x256xf32, #tpu.memory_space<vmem>>, vector<1x256xf32>,
    %c0_16 = arith.constant 0 : index
    %c0_17 = arith.constant 0 : index
    %40 = vector.load %arg7[%c0_16, %c0_17] : memref<1x256xf32, #tpu.memory_space<vmem>>, vector<1x256xf32>
    %41 = arith.addf %40, %18 : vector<1x256xf32>
    %c0_18 = arith.constant 0 : index
    %c0_19 = arith.constant 0 : index
    %42 = vector.load %arg7[%c0_18, %c0_19] : memref<1x256xf32, #tpu.memory_space<vmem>>, vector<1x256xf32>
    tpu.vector_store %arg7[%c0_18, %c0_19], %41 {strides = array<i32>} : memref<1x256xf32, #tpu.memory_space<vmem>>, vector<1x256xf32>,
    %c0_i32_20 = arith.constant 0 : i32
    %43 = arith.cmpi eq, %arg1, %c0_i32_20 : i32
    %44 = arith.extui %43 : i1 to i32
    %c0_i32_21 = arith.constant 0 : i32
    %45 = arith.cmpi ne, %44, %c0_i32_21 : i32
    scf.if %45 {
      %c0_22 = arith.constant 0 : index
      %c0_23 = arith.constant 0 : index
      %46 = vector.load %arg6[%c0_22, %c0_23] : memref<1x256xf32, #tpu.memory_space<vmem>>, vector<1x256xf32>
      %cst_24 = arith.constant dense<0.000000e+00> : vector<1xf32>
      %47 = vector.multi_reduction <add>, %46, %cst_24 [1] : vector<1x256xf32> to vector<1xf32>
      %48 = vector.shape_cast %47 : vector<1xf32> to vector<1x1xf32>
      %c0_25 = arith.constant 0 : index
      %c0_26 = arith.constant 0 : index
      %c0_27 = arith.constant 0 : index
      %49 = vector.load %arg4[%c0_25, %c0_26, %c0_27] : memref<1x1x1xf32, #tpu.memory_space<vmem>>, vector<1x1x1xf32>
      %50 = vector.shape_cast %49 : vector<1x1x1xf32> to vector<1x1xf32>
      %51 = vector.shape_cast %48 : vector<1x1xf32> to vector<1x1x1xf32>
      tpu.vector_store %arg4[%c0_25, %c0_26, %c0_27], %51 {strides = array<i32>} : memref<1x1x1xf32, #tpu.memory_space<vmem>>, vector<1x1x1xf32>,
      %c0_28 = arith.constant 0 : index
      %c0_29 = arith.constant 0 : index
      %52 = vector.load %arg7[%c0_28, %c0_29] : memref<1x256xf32, #tpu.memory_space<vmem>>, vector<1x256xf32>
      %cst_30 = arith.constant dense<0.000000e+00> : vector<1xf32>
      %53 = vector.multi_reduction <add>, %52, %cst_30 [1] : vector<1x256xf32> to vector<1xf32>
      %54 = vector.shape_cast %53 : vector<1xf32> to vector<1x1xf32>
      %c0_31 = arith.constant 0 : index
      %c0_32 = arith.constant 0 : index
      %c0_33 = arith.constant 0 : index
      %55 = vector.load %arg5[%c0_31, %c0_32, %c0_33] : memref<1x1x1xf32, #tpu.memory_space<vmem>>, vector<1x1x1xf32>
      %56 = vector.shape_cast %55 : vector<1x1x1xf32> to vector<1x1xf32>
      %57 = vector.shape_cast %54 : vector<1x1xf32> to vector<1x1x1xf32>
      tpu.vector_store %arg5[%c0_31, %c0_32, %c0_33], %57 {strides = array<i32>} : memref<1x1x1xf32, #tpu.memory_space<vmem>>, vector<1x1x1xf32>,
    } else {
    }
    return
  }
  func.func @transform_0(%arg0: i32, %arg1: i32) -> (i32, i32, i32) {
    %c0_i32 = arith.constant 0 : i32
    %c0_i32_0 = arith.constant 0 : i32
    return %arg0, %c0_i32, %arg1 : i32, i32, i32
  }
  func.func @transform_1(%arg0: i32, %arg1: i32) -> (i32, i32, i32) {
    %c0_i32 = arith.constant 0 : i32
    %c0_i32_0 = arith.constant 0 : i32
    return %arg0, %c0_i32, %arg1 : i32, i32, i32
  }
  func.func @transform_2(%arg0: i32, %arg1: i32) -> (i32, i32, i32) {
    %c0_i32 = arith.constant 0 : i32
    %c0_i32_0 = arith.constant 0 : i32
    %c0_i32_1 = arith.constant 0 : i32
    return %arg0, %c0_i32, %c0_i32_0 : i32, i32, i32
  }
  func.func @transform_3(%arg0: i32, %arg1: i32) -> (i32, i32, i32) {
    %c0_i32 = arith.constant 0 : i32
    %c0_i32_0 = arith.constant 0 : i32
    %c0_i32_1 = arith.constant 0 : i32
    return %arg0, %c0_i32, %c0_i32_0 : i32, i32, i32
  }
}

</mosaic_0001>

<llo_original>
// kernel: entropymax_loss.1
$region0: #{entropymax_loss.1}
  #allocation0 [shape = 'u32[]', space=smem, size = 0x4, offset = 0x4, fixed_abs, tag = 'smem constant byte address 0x4 - core index']
  #allocation1 [shape = 'u32[144,128]{1,0:T(1,128)}', space=vmem, size = 0x12000, scoped, tag = 'internal scratch']
  #allocation2 [shape = 'f32[1,256]{1,0:T(1,128)}', space=vmem, size = 0x400, scoped, tag = 'scratch operand']
  #allocation3 [shape = 'f32[1,256]{1,0:T(1,128)}', space=vmem, size = 0x400, scoped, tag = 'scratch operand']
  %s0 = inlined_call_operand.vmem [shape: f32[2,4,256], index: 0, kind: input, shape index: {}]
  %s1 = inlined_call_operand.vmem [shape: s32[2,1,256], index: 1, kind: input, shape index: {}]
  %s2 = inlined_call_operand.vmem [shape: f32[2,1,1], index: 2, kind: output, shape index: {0}]
  %s3 = inlined_call_operand.vmem [shape: f32[2,1,1], index: 3, kind: output, shape index: {1}]
  %4 = xla_tuple %s2, %s3
  %s5 = sld [smem:[#allocation0]]
  $region57: #{entropymax_loss.1} parent=0
    _
  %s7 = ssub.s32 1, %s5
  %s8 = scalar_select 0, %s7, %s5
  loop: start=0, step=1, limit=4
  $region2: #{entropymax_loss.1} parent=0 // loop_pre_header
    _
  $region3: #{entropymax_loss.1} parent=0 // loop_header
    %s10 = sphi 0, %s14
    %p11 = scmp.ge.s32.totalorder %s10, 4
    %s17 = sphi 0, %s29
    %s18 = sphi 0, %s25
    %s19 = sphi 0, %s17
    %s20 = sphi 0, %s18
    %s21 = sphi 0, %s19
    %s22 = sphi 0, %s20
    %s34 = sphi 0, %s36
    %s37 = sphi 0, %s34
    %s38 = sphi 0, %s37
    %s54 = sphi 0, %s38
    %s62 = sphi 0, %s64
    %s65 = sphi 0, %s62
    %s66 = sphi 0, %s65
    %s82 = sphi 0, %s66
    %s88 = sphi 0, %s90
    %s91 = sphi 0, %s88
    %s92 = sphi 0, %s91
    %s108 = sphi 0, %s92
    %s114 = sphi 0, %s116
    %s117 = sphi 0, %s114
    %s118 = sphi 0, %s117
    %s134 = sphi 0, %s118
  $region4: #{entropymax_loss.1} parent=0 // loop_header_branch
    %13 = sbr.rel (%p11) target = $region8
  $region5: #{entropymax_loss.1} parent=0 // loop_body
    %s15 = ssub.s32 %s10, 1
    %s16 = ssub.s32 %s10, 2
    %s23 = sadd.s32 1, %s18
    %p24 = scmp.ge.s32.totalorder %s23, 1
    %s25 = scalar_select %p24, 0, %s23
    %s26 = sadd.s32 1, %s17
    %s27 = scalar_select %p24, %s26, %s17
    %p28 = scmp.ge.s32.totalorder %s27, 2
    %s29 = scalar_select %p28, 0, %s27
    %s30 = ssub.s32 %s17, %s29
    %s31 = ssub.s32 %s18, %s25
    %s32 = sor.u32 %s30, %s31
    %p33 = scmp.eq.s32.totalorder %s32, 0
    %s35 = sadd.s32 %s34, 1
    %s36 = scalar_select %p33, %s34, %s35
    %p39 = pneg %p33
    %p40 = scmp.eq.s32.totalorder %s10, 1
    %p41 = por %p39, %p40
    %p42 = scmp.ne.s32.totalorder %s34, %s37
    %p43 = scmp.eq.s32.totalorder %s10, 0
    %p44 = por %p42, %p43
    %p45 = scmp.ne.s32.totalorder %s34, %s37
    %p46 = scmp.eq.s32.totalorder %s15, 1
    %p47 = por %p45, %p46
    %p48 = scmp.ne.s32.totalorder %s37, %s38
    %p49 = scmp.eq.s32.totalorder %s15, 0
    %p50 = por %p48, %p49
    %p51 = scmp.ne.s32.totalorder %s37, %s38
    %p52 = scmp.eq.s32.totalorder %s16, 1
    %p53 = por %p51, %p52
    %p55 = scmp.ne.s32.totalorder %s38, %s54
    %p56 = scmp.eq.s32.totalorder %s16, 0
    %p57 = por %p55, %p56
    %s58 = ssub.s32 %s17, %s29
    %s59 = ssub.s32 %s18, %s25
    %s60 = sor.u32 %s58, %s59
    %p61 = scmp.eq.s32.totalorder %s60, 0
    %s63 = sadd.s32 %s62, 1
    %s64 = scalar_select %p61, %s62, %s63
    %p67 = pneg %p61
    %p68 = scmp.eq.s32.totalorder %s10, 1
    %p69 = por %p67, %p68
    %p70 = scmp.ne.s32.totalorder %s62, %s65
    %p71 = scmp.eq.s32.totalorder %s10, 0
    %p72 = por %p70, %p71
    %p73 = scmp.ne.s32.totalorder %s62, %s65
    %p74 = scmp.eq.s32.totalorder %s15, 1
    %p75 = por %p73, %p74
    %p76 = scmp.ne.s32.totalorder %s65, %s66
    %p77 = scmp.eq.s32.totalorder %s15, 0
    %p78 = por %p76, %p77
    %p79 = scmp.ne.s32.totalorder %s65, %s66
    %p80 = scmp.eq.s32.totalorder %s16, 1
    %p81 = por %p79, %p80
    %p83 = scmp.ne.s32.totalorder %s66, %s82
    %p84 = scmp.eq.s32.totalorder %s16, 0
    %p85 = por %p83, %p84
    %s86 = ssub.s32 %s17, %s29
    %p87 = scmp.eq.s32.totalorder %s86, 0
    %s89 = sadd.s32 %s88, 1
    %s90 = scalar_select %p87, %s88, %s89
    %p93 = pneg %p87
    %p94 = scmp.eq.s32.totalorder %s10, 1
    %p95 = por %p93, %p94
    %p96 = scmp.ne.s32.totalorder %s88, %s91
    %p97 = scmp.eq.s32.totalorder %s10, 0
    %p98 = por %p96, %p97
    %p99 = scmp.ne.s32.totalorder %s88, %s91
    %p100 = scmp.eq.s32.totalorder %s15, 1
    %p101 = por %p99, %p100
    %p102 = scmp.ne.s32.totalorder %s91, %s92
    %p103 = scmp.eq.s32.totalorder %s15, 0
    %p104 = por %p102, %p103
    %p105 = scmp.ne.s32.totalorder %s91, %s92
    %p106 = scmp.eq.s32.totalorder %s16, 1
    %p107 = por %p105, %p106
    %p109 = scmp.ne.s32.totalorder %s92, %s108
    %p110 = scmp.eq.s32.totalorder %s16, 0
    %p111 = por %p109, %p110
    %s112 = ssub.s32 %s17, %s29
    %p113 = scmp.eq.s32.totalorder %s112, 0
    %s115 = sadd.s32 %s114, 1
    %s116 = scalar_select %p113, %s114, %s115
    %p119 = pneg %p113
    %p120 = scmp.eq.s32.totalorder %s10, 1
    %p121 = por %p119, %p120
    %p122 = scmp.ne.s32.totalorder %s114, %s117
    %p123 = scmp.eq.s32.totalorder %s10, 0
    %p124 = por %p122, %p123
    %p125 = scmp.ne.s32.totalorder %s114, %s117
    %p126 = scmp.eq.s32.totalorder %s15, 1
    %p127 = por %p125, %p126
    %p128 = scmp.ne.s32.totalorder %s117, %s118
    %p129 = scmp.eq.s32.totalorder %s15, 0
    %p130 = por %p128, %p129
    %p131 = scmp.ne.s32.totalorder %s117, %s118
    %p132 = scmp.eq.s32.totalorder %s16, 1
    %p133 = por %p131, %p132
    %p135 = scmp.ne.s32.totalorder %s118, %s134
    %p136 = scmp.eq.s32.totalorder %s16, 0
    %p137 = por %p135, %p136
    %p138 = scmp.le.s32.totalorder 1, %s10
    %p139 = scmp.lt.s32.totalorder %s10, 3
    %p140 = pnand %p138, %p139
    %p141 = pneg %p140
    // Predicated region
    $region9: #{entropymax_loss.1} parent=5 // pred_check
      _
    $region10: #{entropymax_loss.1} parent=5 // pred_check_branch
      %143 = sbr.rel (%p140) target = $region12
    $region11: #{entropymax_loss.1} parent=5 // pred_region
      %s144 = ssub.s32 %s10, 1
    $region12: #{entropymax_loss.1} parent=5 // pred_fallthru
      _
    %p145 = scmp.lt.s32.totalorder %s10, 2
    // Predicated region
    $region13: #{entropymax_loss.1} parent=5 // pred_check
      %p146 = pneg %p145
    $region14: #{entropymax_loss.1} parent=5 // pred_check_branch
      %148 = sbr.rel (%p146) target = $region16
    $region15: #{entropymax_loss.1} parent=5 // pred_region
      // Predicated region
      $region17: #{entropymax_loss.1} parent=15 // pred_check
        %p149 = pneg %p44
      $region18: #{entropymax_loss.1} parent=15 // pred_check_branch
        %151 = sbr.rel (%p149) target = $region20
      $region19: #{entropymax_loss.1} parent=15 // pred_region
        %s152 = smul.u32 2, %s18
        %p153 = scmp.lt.s32.totalorder %s17, 1
        %s154 = scalar_select %p153, %s17, 1
        %p155 = scmp.lt.s32.totalorder %s152, 1
        %s156 = scalar_select %p155, %s152, 1
        %s157 = smul.addr %s154, 2
        %s158 = sadd.s32 %s156, %s157
        %s159 = smul.addr %s158, 4
        %s160 = scalar_lea.vmem %s0, %s159
        %s161 = smul.u32 2, %s18
      $region20: #{entropymax_loss.1} parent=15 // pred_fallthru
        _
      // Predicated region
      $region21: #{entropymax_loss.1} parent=15 // pred_check
        %p162 = pneg %p72
      $region22: #{entropymax_loss.1} parent=15 // pred_check_branch
        %164 = sbr.rel (%p162) target = $region24
      $region23: #{entropymax_loss.1} parent=15 // pred_region
        %s165 = smul.u32 2, %s18
        %p166 = scmp.lt.s32.totalorder %s17, 1
        %s167 = scalar_select %p166, %s17, 1
        %p168 = scmp.lt.s32.totalorder %s165, 1
        %s169 = scalar_select %p168, %s165, 1
        %s170 = smul.addr %s167, 2
        %s171 = sadd.s32 %s169, %s170
        %s172 = scalar_lea.vmem %s1, %s171
        %s173 = smul.u32 2, %s18
      $region24: #{entropymax_loss.1} parent=15 // pred_fallthru
        _
    $region16: #{entropymax_loss.1} parent=5 // pred_fallthru
      _
    %p174 = scmp.le.s32.totalorder 1, %s10
    %p175 = scmp.lt.s32.totalorder %s10, 3
    %p176 = pnand %p174, %p175
    %p177 = pneg %p176
    // Predicated region
    $region25: #{entropymax_loss.1} parent=5 // pred_check
      _
    $region26: #{entropymax_loss.1} parent=5 // pred_check_branch
      %179 = sbr.rel (%p176) target = $region28
    $region27: #{entropymax_loss.1} parent=5 // pred_region
      %s180 = ssub.s32 %s10, 1
      %s181 = smul.u32 2, %s20
      %p182 = scmp.lt.s32.totalorder %s19, 1
      %s183 = scalar_select %p182, %s19, 1
      %p184 = scmp.lt.s32.totalorder %s181, 1
      %s185 = scalar_select %p184, %s181, 1
      %s186 = smul.addr %s183, 2
      %s187 = sadd.s32 %s185, %s186
      %s188 = smul.addr %s187, 4
      %s189 = scalar_lea.vmem %s0, %s188
      %p190 = pneg %p50
      %p191 = pneg %p47
      %s192 = smul.u32 2, %s20
      %p193 = scmp.lt.s32.totalorder %s19, 1
      %s194 = scalar_select %p193, %s19, 1
      %p195 = scmp.lt.s32.totalorder %s192, 1
      %s196 = scalar_select %p195, %s192, 1
      %s197 = smul.addr %s194, 2
      %s198 = sadd.s32 %s196, %s197
      %s199 = scalar_lea.vmem %s1, %s198
      %p200 = pneg %p78
      %p201 = pneg %p75
      %p202 = pneg %p104
      %p203 = pneg %p101
      %p204 = scmp.lt.s32.totalorder %s19, 1
      %s205 = scalar_select %p204, %s19, 1
      %s206 = scalar_lea.vmem %s2, %s205
      %p207 = pneg %p130
      %p208 = pneg %p127
      %p209 = scmp.lt.s32.totalorder %s19, 1
      %s210 = scalar_select %p209, %s19, 1
      %s211 = scalar_lea.vmem %s3, %s210
      %s212 = smul.u32 2, %s20
      %p213 = scmp.lt.s32.totalorder %s19, 1
      %s214 = scalar_select %p213, %s19, 1
      %p215 = scmp.lt.s32.totalorder %s212, 1
      %s216 = scalar_select %p215, %s212, 1
      %s217 = smul.addr %s214, 2
      %s218 = sadd.s32 %s216, %s217
      %s219 = smul.addr %s218, 4
      %s220 = scalar_lea.vmem %s0, %s219
      %s221 = smul.u32 2, %s20
      %s222 = smul.u32 2, %s20
      %p223 = scmp.lt.s32.totalorder %s19, 1
      %s224 = scalar_select %p223, %s19, 1
      %p225 = scmp.lt.s32.totalorder %s222, 1
      %s226 = scalar_select %p225, %s222, 1
      %s227 = smul.addr %s224, 2
      %s228 = sadd.s32 %s226, %s227
      %s229 = scalar_lea.vmem %s1, %s228
      %s230 = smul.u32 2, %s20
      %p231 = scmp.lt.s32.totalorder %s19, 1
      %s232 = scalar_select %p231, %s19, 1
      %s233 = scalar_lea.vmem %s2, %s232
      %p234 = scmp.lt.s32.totalorder %s19, 1
      %s235 = scalar_select %p234, %s19, 1
      %s236 = scalar_lea.vmem %s3, %s235
      %p237 = scmp.eq.s32.totalorder %s20, 0
      // Predicated region
      $region29: #{entropymax_loss.1} parent=27 // pred_check
        %p238 = pneg %p237
      $region30: #{entropymax_loss.1} parent=27 // pred_check_branch
        %240 = sbr.rel (%p238) target = $region32
      $region31: #{entropymax_loss.1} parent=27 // pred_region
        %v241 = vlaneseq
        %vm242 = vcmp.ge.s32.totalorder %v241, 0
        %vm243 = vcmp.lt.s32.totalorder %v241, 256
        %vm244 = vmand %vm242, %vm243
        %245 = vst.msk [vmem:[#allocation2] sm:$0x3] %vm244, 0.0
        %246 = vst.msk [vmem:[#allocation3] sm:$0x3] %vm244, 0.0
      $region32: #{entropymax_loss.1} parent=27 // pred_fallthru
        _
      %v247 = vld [vmem:[%s220] sm:$0xff]
      %v248 = vld [vmem:[%s229] sm:$0x3]
      %s249 = smul.u32 %s20, 256
      %v250 = vlaneseq
      %v251 = vand.u32 %v250, 127
      %v252 = vadd.s32 %v251, 128
      %v253 = vstv %s249
      %v254 = vadd.s32 %v253, %v251
      %v255 = vadd.s32 %v253, %v252
      %vm256 = vcmp.lt.s32.totalorder %v254, 256
      %vm257 = vcmp.lt.s32.totalorder %v255, 256
      %vm258 = vcmp.eq.s32.totalorder %v248, 100
      %v259 = vsel %vm258, 1, 0
      %v260 = vlaneseq
      %v261 = vshrl.u32 %v260, 7
      %v262 = vsub.s32 0, %v261
      %v263 = vrot.slane %v259, %v262
      %v264 = vlaneseq
      %v265 = vshrl.u32 %v264, 7
      %v266 = vsub.s32 1, %v265
      %v267 = vrot.slane %v259, %v266
      %vm268 = vcmp.ne.s32.totalorder %v263, 0
      %vm269 = vcmp.ne.s32.totalorder %v267, 0
      %vm270 = vmand %vm256, %vm268
      %vm271 = vmand %vm257, %vm269
      %v272 = vsel %vm270, 1.0, 0.0
      %v273 = vsel %vm271, 1.0, 0.0
      %v274 = vsel %vm256, 1, 0
      %v275 = vsel %vm257, 1, 0
      %vm276 = vcmp.eq.s32.totalorder %v274, 1
      %vm277 = vcmp.eq.s32.totalorder %v275, 1
      %v279 = vcombine.high %v247, %v247
      %v281 = vsel %vm276, %v247, 0.0
      %v282 = vsel %vm277, %v279, 0.0
      %vm283 = vcmask 1043456
      %v284 = vsel %vm283, %v281, -inf
      %v285 = vrot.slane %v284, 4
      %v286 = vmax.f32 %v284, %v285
      %v287 = vrot.slane %v286, 2
      %v288 = vmax.f32 %v286, %v287
      %v289 = vrot.slane %v288, 1
      %v290 = vmax.f32 %v288, %v289
      %v291 = vsel %vm283, %v282, -inf
      %v292 = vrot.slane %v291, 4
      %v293 = vmax.f32 %v291, %v292
      %v294 = vrot.slane %v293, 2
      %v295 = vmax.f32 %v293, %v294
      %v296 = vrot.slane %v295, 1
      %v297 = vmax.f32 %v295, %v296
      %v298 = vsub.f32 %v281, %v290
      %v299 = vsub.f32 %v282, %v297
      %v300 = vmul.f32 %v298, 1.442695
      %v301 = vpow.pop %v300
      %v302 = vmul.f32 %v299, 1.442695
      %v303 = vpow.pop %v302
      %v304 = vsel %vm283, %v301, 0.0
      %v305 = vrot.slane %v304, 4
      %v306 = vadd.f32 %v304, %v305
      %v307 = vrot.slane %v306, 2
      %v308 = vadd.f32 %v306, %v307
      %v309 = vrot.slane %v308, 1
      %v310 = vadd.f32 %v308, %v309
      %v311 = vsel %vm283, %v303, 0.0
      %v312 = vrot.slane %v311, 4
      %v313 = vadd.f32 %v311, %v312
      %v314 = vrot.slane %v313, 2
      %v315 = vadd.f32 %v313, %v314
      %v316 = vrot.slane %v315, 1
      %v317 = vadd.f32 %v315, %v316
      %v318 = vmul.f32 %v301, %v298
      %v319 = vmul.f32 %v303, %v299
      %v320 = vsel %vm283, %v318, 0.0
      %v321 = vrot.slane %v320, 4
      %v322 = vadd.f32 %v320, %v321
      %v323 = vrot.slane %v322, 2
      %v324 = vadd.f32 %v322, %v323
      %v325 = vrot.slane %v324, 1
      %v326 = vadd.f32 %v324, %v325
      %v327 = vsel %vm283, %v319, 0.0
      %v328 = vrot.slane %v327, 4
      %v329 = vadd.f32 %v327, %v328
      %v330 = vrot.slane %v329, 2
      %v331 = vadd.f32 %v329, %v330
      %v332 = vrot.slane %v331, 1
      %v333 = vadd.f32 %v331, %v332
      %v334 = vrcp.pop %v310
      %v335 = vmul.f32 %v326, %v334
      %v336 = vrcp.pop %v317
      %v337 = vmul.f32 %v333, %v336
      %v338 = vlog2.pop %v310
      %v339 = vmul.f32 %v338, 0.6931472
      %v340 = vlog2.pop %v317
      %v341 = vmul.f32 %v340, 0.6931472
      %v342 = vsub.f32 %v335, %v339
      %v343 = vsub.f32 %v337, %v341
      %v344 = vld [vmem:[#allocation2] sm:$0x3]
      %v345 = vmul.f32 %v342, %v272
      %v346 = vmul.f32 %v343, %v273
      %v349 = vcombine.low %v345, %v346
      %v351 = vunpack.c.l.s4 1966171168
      %v352 = vunpack.c.0.s8 %v351
      %v353 = vlaneseq
      %v354 = vshrl.u32 %v353, 7
      %v355 = vsub.s32 %v352, %v354
      %v356 = vrot.slane %v349, %v355
      %v358 = vunpack.c.l.s4 1966171168
      %v359 = vunpack.c.0.s8 %v358
      %v360 = vlaneseq
      %v361 = vshrl.u32 %v360, 7
      %v362 = vsub.s32 %v359, %v361
      %v363 = vrot.slane %v356, %v362
      %v365 = vadd.f32 %v344, %v363
      %v366 = vlaneseq
      %vm367 = vcmp.ge.s32.totalorder %v366, 0
      %vm368 = vcmp.lt.s32.totalorder %v366, 256
      %vm369 = vmand %vm367, %vm368
      %370 = vst.msk [vmem:[#allocation2] sm:$0x3] %vm369, %v365
      %v371 = vld [vmem:[#allocation3] sm:$0x3]
      %v374 = vcombine.low %v272, %v273
      %v376 = vunpack.c.l.s4 1966171168
      %v377 = vunpack.c.0.s8 %v376
      %v378 = vlaneseq
      %v379 = vshrl.u32 %v378, 7
      %v380 = vsub.s32 %v377, %v379
      %v381 = vrot.slane %v374, %v380
      %v383 = vunpack.c.l.s4 1966171168
      %v384 = vunpack.c.0.s8 %v383
      %v385 = vlaneseq
      %v386 = vshrl.u32 %v385, 7
      %v387 = vsub.s32 %v384, %v386
      %v388 = vrot.slane %v381, %v387
      %v390 = vadd.f32 %v371, %v388
      %391 = vst.msk [vmem:[#allocation3] sm:$0x3] %vm369, %v390
      // Predicated region
      $region33: #{entropymax_loss.1} parent=27 // pred_check
        %p392 = pneg %p237
      $region34: #{entropymax_loss.1} parent=27 // pred_check_branch
        %394 = sbr.rel (%p392) target = $region36
      $region35: #{entropymax_loss.1} parent=27 // pred_region
        %v395 = vld [vmem:[#allocation2] sm:$0x3]
        %v397 = vlaneseq
        %v398 = vshrl.u32 %v397, 7
        %v399 = vsub.s32 0, %v398
        %v400 = vrot.slane %v395, %v399
        %v401 = vlaneseq
        %v402 = vshrl.u32 %v401, 7
        %v403 = vsub.s32 1, %v402
        %v404 = vrot.slane %v395, %v403
        %vm407 = vcmask 1040384
        %v408 = vsel %vm407, %v400, 0.0
        %v409 = vsel %vm407, %v404, 0.0
        %v410 = vadd.f32 %v408, %v409
        %411 = vadd.xlane.f32.xlu0 %v410
        %v412 = vpop.xlane.xlu0 %411
        %vm413 = vcmask 0
        %414 = vst.msk [vmem:[%s233] sm:$0x1] %vm413, %v412
        %v415 = vld [vmem:[#allocation3] sm:$0x3]
        %v417 = vlaneseq
        %v418 = vshrl.u32 %v417, 7
        %v419 = vsub.s32 0, %v418
        %v420 = vrot.slane %v415, %v419
        %v421 = vlaneseq
        %v422 = vshrl.u32 %v421, 7
        %v423 = vsub.s32 1, %v422
        %v424 = vrot.slane %v415, %v423
        %v427 = vsel %vm407, %v420, 0.0
        %v428 = vsel %vm407, %v424, 0.0
        %v429 = vadd.f32 %v427, %v428
        %430 = vadd.xlane.f32.xlu0 %v429
        %v431 = vpop.xlane.xlu0 %430
        %432 = vst.msk [vmem:[%s236] sm:$0x1] %vm413, %v431
      $region36: #{entropymax_loss.1} parent=27 // pred_fallthru
        _
      %p433 = scmp.lt.s32.totalorder %s19, 1
      %s434 = scalar_select %p433, %s19, 1
      %s435 = scalar_lea.vmem %s2, %s434
      %p436 = scmp.lt.s32.totalorder %s19, 1
      %s437 = scalar_select %p436, %s19, 1
      %s438 = scalar_lea.vmem %s3, %s437
      // Predicated region
      $region37: #{entropymax_loss.1} parent=27 // pred_check
        %p439 = pneg %p101
      $region38: #{entropymax_loss.1} parent=27 // pred_check_branch
        %441 = sbr.rel (%p439) target = $region40
      $region39: #{entropymax_loss.1} parent=27 // pred_region
        _
      $region40: #{entropymax_loss.1} parent=27 // pred_fallthru
        _
      // Predicated region
      $region41: #{entropymax_loss.1} parent=27 // pred_check
        %p442 = pneg %p127
      $region42: #{entropymax_loss.1} parent=27 // pred_check_branch
        %444 = sbr.rel (%p442) target = $region44
      $region43: #{entropymax_loss.1} parent=27 // pred_region
        _
      $region44: #{entropymax_loss.1} parent=27 // pred_fallthru
        _
    $region28: #{entropymax_loss.1} parent=5 // pred_fallthru
      _
    %p445 = scmp.le.s32.totalorder 2, %s10
    // Predicated region
    $region45: #{entropymax_loss.1} parent=5 // pred_check
      %p446 = pneg %p445
    $region46: #{entropymax_loss.1} parent=5 // pred_check_branch
      %448 = sbr.rel (%p446) target = $region48
    $region47: #{entropymax_loss.1} parent=5 // pred_region
      %s449 = ssub.s32 %s10, 2
      // Predicated region
      $region49: #{entropymax_loss.1} parent=47 // pred_check
        %p450 = pneg %p107
      $region50: #{entropymax_loss.1} parent=47 // pred_check_branch
        %452 = sbr.rel (%p450) target = $region52
      $region51: #{entropymax_loss.1} parent=47 // pred_region
        %p453 = scmp.lt.s32.totalorder %s21, 1
        %s454 = scalar_select %p453, %s21, 1
        %s455 = scalar_lea.vmem %s2, %s454
      $region52: #{entropymax_loss.1} parent=47 // pred_fallthru
        _
      // Predicated region
      $region53: #{entropymax_loss.1} parent=47 // pred_check
        %p456 = pneg %p133
      $region54: #{entropymax_loss.1} parent=47 // pred_check_branch
        %458 = sbr.rel (%p456) target = $region56
      $region55: #{entropymax_loss.1} parent=47 // pred_region
        %p459 = scmp.lt.s32.totalorder %s21, 1
        %s460 = scalar_select %p459, %s21, 1
        %s461 = scalar_lea.vmem %s3, %s460
      $region56: #{entropymax_loss.1} parent=47 // pred_fallthru
        _
    $region48: #{entropymax_loss.1} parent=5 // pred_fallthru
      _
  $region6: #{entropymax_loss.1} parent=0 // loop_footer
    %s14 = sadd.s32 1, %s10
  $region7: #{entropymax_loss.1} parent=0 // loop_footer_branch
    %9 = sbr.rel target = $region3
  $region8: #{entropymax_loss.1} parent=0 // loop_exit
    _

</llo_original>
